<compile_context>
chip_gen: v5e
topology: v5e:2x2
jax: 0.10.0
libtpu: 0.0.40
codegen_flags: <defaults>
</compile_context>

<pallas_src>
import functools

import jax
import jax.numpy as jnp
from jax.experimental import pallas as pl
from jax.experimental.pallas import tpu as pltpu


def _channel_attention_kernel(beta_ref, x_ref, o_ref, *, matmul_dtype):
    # beta_ref: (1, 1) f32 scalar in SMEM.
    # x_ref:    (C, HWp) tile for the current batch element (VMEM).
    # o_ref:    (C_BLK, HWp) output row-block (VMEM).
    c_full = x_ref.shape[0]
    c_blk = o_ref.shape[0]

    x_full = x_ref[...]                              # (C, HWp), input dtype
    if c_blk == c_full:
        x_rows = x_full                              # single row block per batch
    else:
        i = pl.program_id(1)
        start = pl.multiple_of(i * c_blk, c_blk)
        x_rows = x_ref[pl.ds(start, c_blk), :]       # (C_BLK, HWp)

    xk = x_full.astype(matmul_dtype)
    xq = x_rows.astype(matmul_dtype)

    # gram[r, c] = sum_hw xq[r, hw] * xk[c, hw]  -> (C_BLK, C), f32 accumulation.
    gram = jax.lax.dot_general(
        xq, xk,
        dimension_numbers=(((1,), (1,)), ((), ())),
        preferred_element_type=jnp.float32,
    )

    # softmax(rowmax(gram) - gram) == softmax(-gram); numerically-stable form:
    #   exp(rowmin(gram) - gram) / sum(...)   (one XLU reduction saved).
    e = jnp.exp(jnp.min(gram, axis=-1, keepdims=True) - gram)
    attn = e * pl.reciprocal(jnp.sum(e, axis=-1, keepdims=True), approx=True)

    # feat_e = attn @ x  -> (C_BLK, HWp), f32 accumulation on the MXU.
    feat_e = jnp.dot(attn.astype(matmul_dtype), xk,
                     preferred_element_type=jnp.float32)

    beta = beta_ref[0, 0]
    o_ref[...] = (beta * feat_e + x_rows.astype(jnp.float32)).astype(o_ref.dtype)


def _pick_c_block(C, HW_pad, itemsize):
    """Largest row block (multiple of 8, divisor of C) whose working set fits a
    conservative ~48 MiB VMEM budget; whole C when C is small."""
    if C <= 256:
        return C
    budget = 48 * 1024 * 1024
    divisors = [d for d in (256, 128, 64, 32, 16, 8) if C % d == 0]
    if not divisors:
        return C
    for d in divisors:
        need = (2 * C * HW_pad * itemsize        # double-buffered x tile
                + 2 * d * HW_pad * itemsize      # double-buffered out block
                + 3 * d * C * 4                  # gram / exp / attn (f32)
                + 2 * d * HW_pad * 4)            # feat_e + residual temps (f32)
        if need <= budget:
            return d
    return divisors[-1]


def channel_attention(x, beta, *, matmul_dtype=jnp.bfloat16, c_block=None):
    """DANet channel attention: out = beta * softmax(rowmax(G) - G) @ A + x,
    with A = x.reshape(B, C, H*W), G = A @ A^T.

    x: (B, C, H, W); beta: scalar parameter, shape (1,) or ().
    matmul_dtype: dtype fed to the MXU (accumulation is f32); default bf16 for
                  throughput, pass jnp.float32 for strict f32 parity.
    """
    B, C, H, W = x.shape
    HW = H * W
    HW_pad = ((HW + 127) // 128) * 128            # lane-dense last dim

    x_flat = x.reshape(B, C, HW)
    if HW_pad != HW:
        x_flat = jnp.pad(x_flat, ((0, 0), (0, 0), (0, HW_pad - HW)))

    itemsize = x_flat.dtype.itemsize
    if c_block is None:
        c_block = _pick_c_block(C, HW_pad, itemsize)
    assert C % c_block == 0, "c_block must divide C"
    n_row_blocks = C // c_block

    beta_arr = jnp.asarray(beta, dtype=jnp.float32).reshape(1, 1)

    need = (2 * C * HW_pad * itemsize
            + 2 * c_block * HW_pad * itemsize
            + 3 * c_block * C * 4
            + 2 * c_block * HW_pad * 4)
    vmem_limit = int(min(max(need * 1.5, 32 * 1024 * 1024), 64 * 1024 * 1024))

    kernel = functools.partial(_channel_attention_kernel, matmul_dtype=matmul_dtype)

    out_flat = pl.pallas_call(
        kernel,
        out_shape=jax.ShapeDtypeStruct((B, C, HW_pad), x.dtype),
        grid_spec=pltpu.PrefetchScalarGridSpec(
            num_scalar_prefetch=0,
            grid=(B, n_row_blocks),
            in_specs=[
                pl.BlockSpec(memory_space=pltpu.MemorySpace.SMEM),       # beta (1,1)
                # Full (C, HWp) tile; block index ignores the row axis, so it is
                # DMA'd once per batch element and re-used by every row block.
                pl.BlockSpec((None, C, HW_pad), lambda b, i: (b, 0, 0)),
            ],
            out_specs=pl.BlockSpec((None, c_block, HW_pad), lambda b, i: (b, i, 0)),
        ),
        compiler_params=pltpu.CompilerParams(
            dimension_semantics=("parallel", "parallel"),
            vmem_limit_bytes=vmem_limit,
        ),
    )(beta_arr, x_flat)

    if HW_pad != HW:
        out_flat = out_flat[:, :, :HW]
    return out_flat.reshape(B, C, H, W)


def _reference(x, beta, matmul_dtype=jnp.float32):
    B, C, H, W = x.shape
    feat = x.reshape(B, C, H * W).astype(jnp.float32)
    a = feat.astype(matmul_dtype)
    gram = jnp.einsum("bcd,bkd->bck", a, a, preferred_element_type=jnp.float32)
    attn_new = jnp.max(gram, axis=-1, keepdims=True) - gram
    attn = jax.nn.softmax(attn_new, axis=-1)
    feat_e = jnp.einsum("bck,bkd->bcd", attn.astype(matmul_dtype), a,
                        preferred_element_type=jnp.float32)
    out = jnp.asarray(beta).reshape(()) * feat_e + feat
    return out.reshape(B, C, H, W).astype(x.dtype)


if __name__ == "__main__":
    key = jax.random.PRNGKey(0)
    B, C, H, W = 2, 4, 16, 16
    # Moderate scale keeps the channel softmax away from one-hot saturation so
    # the fp comparison against the reference is meaningful and robust.
    x = 0.25 * jax.random.normal(key, (B, C, H, W), dtype=jnp.float32)

    # nn.Parameter(torch.zeros(1)) -> beta == 0: output must equal the input.
    beta0 = jnp.zeros((1,), dtype=jnp.float32)
    out0 = channel_attention(x, beta0)                       # default bf16 MXU feed
    jax.block_until_ready(out0)
    assert out0.shape == (B, C, H, W)
    assert jnp.allclose(out0, x, atol=1e-6, rtol=1e-6)

    beta = jnp.array([0.5], dtype=jnp.float32)

    # f32 MXU path: tight parity with the f32 reference.
    out_f32 = channel_attention(x, beta, matmul_dtype=jnp.float32)
    jax.block_until_ready(out_f32)
    assert jnp.allclose(out_f32, _reference(x, beta), atol=5e-3, rtol=5e-3)

    # Default bf16 MXU feed (f32 accumulation): still close to the f32 reference.
    out_bf16 = channel_attention(x, beta)
    jax.block_until_ready(out_bf16)
    assert jnp.allclose(out_bf16, _reference(x, beta), atol=1e-2, rtol=1e-2)

    # Non-lane-aligned spatial size exercises the HW zero-padding path.
    x2 = 0.25 * jax.random.normal(jax.random.PRNGKey(1), (1, 4, 10, 10), jnp.float32)
    out2 = channel_attention(x2, beta, matmul_dtype=jnp.float32)
    jax.block_until_ready(out2)
    assert jnp.allclose(out2, _reference(x2, beta), atol=5e-3, rtol=5e-3)

    # Multi-row-block grid path (grid = (B, C // c_block) with c_block < C).
    x3 = 0.25 * jax.random.normal(jax.random.PRNGKey(2), (2, 16, 8, 16), jnp.float32)
    out3 = channel_attention(x3, beta, matmul_dtype=jnp.float32, c_block=8)
    jax.block_until_ready(out3)
    assert jnp.allclose(out3, _reference(x3, beta), atol=5e-3, rtol=5e-3)

    print("KERNEL_OK")
</pallas_src>

<mosaic_0001>
module attributes {stable_mosaic.version = 11 : i64} {
  func.func @_channel_attention_kernel(%arg0: i32, %arg1: i32, %arg2: memref<1x1xf32, #tpu.memory_space<smem>>, %arg3: memref<1x4x256xf32, #tpu.memory_space<vmem>>, %arg4: memref<1x4x256xf32, #tpu.memory_space<vmem>>) attributes {dimension_semantics = [#tpu.dimension_semantics<parallel>, #tpu.dimension_semantics<parallel>], iteration_bounds = array<i64: 2, 1>, scalar_prefetch = 0 : i64, scratch_operands = 0 : i64, tpu.core_type = #tpu.core_type<tc>, window_params = [{transform_indices = @transform_0, window_bounds = array<i64: 1, 1>}, {transform_indices = @transform_1, window_bounds = array<i64: 1, 4, 256>}, {transform_indices = @transform_2, window_bounds = array<i64: 1, 4, 256>}]} {
    %c0 = arith.constant 0 : index
    %c0_0 = arith.constant 0 : index
    %c0_1 = arith.constant 0 : index
    %0 = vector.load %arg3[%c0, %c0_0, %c0_1] : memref<1x4x256xf32, #tpu.memory_space<vmem>>, vector<1x4x256xf32>
    %1 = vector.shape_cast %0 : vector<1x4x256xf32> to vector<4x256xf32>
    %2 = arith.truncf %1 : vector<4x256xf32> to vector<4x256xbf16>
    %3 = arith.truncf %1 : vector<4x256xf32> to vector<4x256xbf16>
    %cst = arith.constant dense<0.000000e+00> : vector<4x4xf32>
    %4 = tpu.matmul %3, %2, %cst {dimension_numbers = #tpu.dot_dimension_numbers<[1], [1], [0], [0], [0, 0, 1, 0], [], []>} : vector<4x256xbf16>, vector<4x256xbf16>, vector<4x4xf32> -> vector<4x4xf32>
    %cst_2 = arith.constant dense<0x7F800000> : vector<4xf32>
    %5 = vector.multi_reduction <minimumf>, %4, %cst_2 [1] : vector<4x4xf32> to vector<4xf32>
    %6 = vector.shape_cast %5 : vector<4xf32> to vector<4x1xf32>
    %7 = vector.broadcast %6 : vector<4x1xf32> to vector<4x4xf32>
    %8 = arith.subf %7, %4 : vector<4x4xf32>
    %9 = math.exp %8 : vector<4x4xf32>
    %cst_3 = arith.constant dense<0.000000e+00> : vector<4xf32>
    %10 = vector.multi_reduction <add>, %9, %cst_3 [1] : vector<4x4xf32> to vector<4xf32>
    %11 = vector.shape_cast %10 : vector<4xf32> to vector<4x1xf32>
    %12 = tpu.reciprocal %11 {approx = true} : vector<4x1xf32> -> vector<4x1xf32>
    %13 = vector.broadcast %12 : vector<4x1xf32> to vector<4x4xf32>
    %14 = arith.mulf %9, %13 : vector<4x4xf32>
    %15 = arith.truncf %14 : vector<4x4xf32> to vector<4x4xbf16>
    %cst_4 = arith.constant dense<0.000000e+00> : vector<4x256xf32>
    %16 = tpu.matmul %15, %2, %cst_4 {dimension_numbers = #tpu.dot_dimension_numbers<[1], [0], [0], [1], [0, 0, 1, 1], [], []>} : vector<4x4xbf16>, vector<4x256xbf16>, vector<4x256xf32> -> vector<4x256xf32>
    %c0_5 = arith.constant 0 : index
    %c0_6 = arith.constant 0 : index
    %17 = memref.load %arg2[%c0_5, %c0_6] : memref<1x1xf32, #tpu.memory_space<smem>>
    %18 = vector.broadcast %17 : f32 to vector<4x256xf32>
    %19 = arith.mulf %18, %16 : vector<4x256xf32>
    %20 = arith.addf %19, %1 : vector<4x256xf32>
    %c0_7 = arith.constant 0 : index
    %c0_8 = arith.constant 0 : index
    %c0_9 = arith.constant 0 : index
    %21 = vector.load %arg4[%c0_7, %c0_8, %c0_9] : memref<1x4x256xf32, #tpu.memory_space<vmem>>, vector<1x4x256xf32>
    %22 = vector.shape_cast %21 : vector<1x4x256xf32> to vector<4x256xf32>
    %23 = vector.shape_cast %20 : vector<4x256xf32> to vector<1x4x256xf32>
    tpu.vector_store %arg4[%c0_7, %c0_8, %c0_9], %23 {strides = array<i32>} : memref<1x4x256xf32, #tpu.memory_space<vmem>>, vector<1x4x256xf32>,
    return
  }
  func.func @transform_0(%arg0: i32, %arg1: i32) -> (i32, i32) {
    %c0_i32 = arith.constant 0 : i32
    %c0_i32_0 = arith.constant 0 : i32
    %c0_i32_1 = arith.constant 0 : i32
    return %c0_i32, %c0_i32_0 : i32, i32
  }
  func.func @transform_1(%arg0: i32, %arg1: i32) -> (i32, i32, i32) {
    %c0_i32 = arith.constant 0 : i32
    %c0_i32_0 = arith.constant 0 : i32
    %c0_i32_1 = arith.constant 0 : i32
    return %arg0, %c0_i32, %c0_i32_0 : i32, i32, i32
  }
  func.func @transform_2(%arg0: i32, %arg1: i32) -> (i32, i32, i32) {
    %c0_i32 = arith.constant 0 : i32
    %c0_i32_0 = arith.constant 0 : i32
    return %arg0, %arg1, %c0_i32 : i32, i32, i32
  }
}

</mosaic_0001>

<llo_original>
// kernel: tpu_custom_call.1
$region0: #{tpu_custom_call.1}
  #allocation0 [shape = 'u32[]', space=smem, size = 0x4, offset = 0x4, fixed_abs, tag = 'smem constant byte address 0x4 - core index']
  #allocation1 [shape = 'u32[72,128]{1,0:T(1,128)}', space=vmem, size = 0x9000, scoped, tag = 'internal scratch']
  #allocation2 [shape = 'f32[1,1]{1,0:T(1,128)S(6)}', space=smem, size = 0x200, scoped, tag = 'scoped memory for tpu_custom_call.1']
  %s0 = inlined_call_operand.<no memory space> [shape: f32[1,1], index: 0, kind: input, shape index: {}]
  %s1 = inlined_call_operand.hbm [shape: f32[2,4,256], index: 1, kind: input, shape index: {}]
  %s2 = inlined_call_operand.hbm [shape: f32[2,4,256], index: 2, kind: output, shape index: {}]
  %s3 = sld [smem:[#allocation0]]
  $region45: #{tpu_custom_call.1} parent=0
    _
  %s5 = ssub.s32 1, %s3
  %s6 = scalar_select 0, %s5, %s3
  %7 = sst [smem:[#allocation2]] %s0
  $region1: #{tpu_custom_call.1} parent=0
    #allocation3 [shape = 'u8[8192]{0}', space=vmem, size = 0x2000, scoped, tag = 'input window, operand 1']
    #allocation4 [shape = 's32[2]{0}', space=sflag, size = 0x8, scoped, tag = 'scoped memory for tpu_custom_call.1']
    #allocation5 [shape = 's32[2]{0}', space=sflag, size = 0x8, scoped, tag = 'scoped memory for tpu_custom_call.1']
    #allocation6 [shape = 'u8[8192]{0}', space=vmem, size = 0x2000, scoped, tag = 'output window, operand 0']
    %8 = vsyncpa [#allocation4], 0
    %s9 = scalar_lea.sflag [#allocation4], 1
    %10 = vsyncpa %s9, 0
    %11 = vsyncpa [#allocation5], 0
    %s12 = scalar_lea.sflag [#allocation5], 1
    %13 = vsyncpa %s12, 0
    loop: start=0, step=1, limit=4
    $region2: #{tpu_custom_call.1} parent=1 // loop_pre_header
      _
    $region3: #{tpu_custom_call.1} parent=1 // loop_header
      %s15 = sphi 0, %s19
      %p16 = scmp.ge.s32.totalorder %s15, 4
      %s22 = sphi 0, %s34
      %s23 = sphi 0, %s30
      %s24 = sphi 0, %s22
      %s25 = sphi 0, %s23
      %s26 = sphi 0, %s24
      %s27 = sphi 0, %s25
      %s35 = sphi 0, %s35
      %s37 = sphi 0, %s35
      %s38 = sphi 0, %s37
      %s52 = sphi 0, %s38
      %s58 = sphi 0, %s60
      %s61 = sphi 0, %s58
      %s62 = sphi 0, %s61
      %s78 = sphi 0, %s62
      %s86 = sphi 0, %s88
      %s89 = sphi 0, %s86
      %s90 = sphi 0, %s89
      %s106 = sphi 0, %s90
    $region4: #{tpu_custom_call.1} parent=1 // loop_header_branch
      %18 = sbr.rel (%p16) target = $region8
    $region5: #{tpu_custom_call.1} parent=1 // loop_body
      %s20 = ssub.s32 %s15, 1
      %s21 = ssub.s32 %s15, 2
      %s28 = sadd.s32 1, %s23
      %p29 = scmp.ge.s32.totalorder %s28, 1
      %s30 = scalar_select %p29, 0, %s28
      %s31 = sadd.s32 1, %s22
      %s32 = scalar_select %p29, %s31, %s22
      %p33 = scmp.ge.s32.totalorder %s32, 2
      %s34 = scalar_select %p33, 0, %s32
      %s36 = sadd.s32 %s35, 1
      %p39 = scmp.eq.s32.totalorder %s15, 1
      %p40 = scmp.ne.s32.totalorder %s35, %s37
      %p41 = scmp.eq.s32.totalorder %s15, 0
      %p42 = por %p40, %p41
      %p43 = scmp.ne.s32.totalorder %s35, %s37
      %p44 = scmp.eq.s32.totalorder %s20, 1
      %p45 = por %p43, %p44
      %p46 = scmp.ne.s32.totalorder %s37, %s38
      %p47 = scmp.eq.s32.totalorder %s20, 0
      %p48 = por %p46, %p47
      %p49 = scmp.ne.s32.totalorder %s37, %s38
      %p50 = scmp.eq.s32.totalorder %s21, 1
      %p51 = por %p49, %p50
      %p53 = scmp.ne.s32.totalorder %s38, %s52
      %p54 = scmp.eq.s32.totalorder %s21, 0
      %p55 = por %p53, %p54
      %s56 = ssub.s32 %s22, %s34
      %p57 = scmp.eq.s32.totalorder %s56, 0
      %s59 = sadd.s32 %s58, 1
      %s60 = scalar_select %p57, %s58, %s59
      %p63 = pneg %p57
      %p64 = scmp.eq.s32.totalorder %s15, 1
      %p65 = por %p63, %p64
      %p66 = scmp.ne.s32.totalorder %s58, %s61
      %p67 = scmp.eq.s32.totalorder %s15, 0
      %p68 = por %p66, %p67
      %p69 = scmp.ne.s32.totalorder %s58, %s61
      %p70 = scmp.eq.s32.totalorder %s20, 1
      %p71 = por %p69, %p70
      %p72 = scmp.ne.s32.totalorder %s61, %s62
      %p73 = scmp.eq.s32.totalorder %s20, 0
      %p74 = por %p72, %p73
      %p75 = scmp.ne.s32.totalorder %s61, %s62
      %p76 = scmp.eq.s32.totalorder %s21, 1
      %p77 = por %p75, %p76
      %p79 = scmp.ne.s32.totalorder %s62, %s78
      %p80 = scmp.eq.s32.totalorder %s21, 0
      %p81 = por %p79, %p80
      %s82 = ssub.s32 %s22, %s34
      %s83 = ssub.s32 %s23, %s30
      %s84 = sor.u32 %s82, %s83
      %p85 = scmp.eq.s32.totalorder %s84, 0
      %s87 = sadd.s32 %s86, 1
      %s88 = scalar_select %p85, %s86, %s87
      %p91 = pneg %p85
      %p92 = scmp.eq.s32.totalorder %s15, 1
      %p93 = por %p91, %p92
      %p94 = scmp.ne.s32.totalorder %s86, %s89
      %p95 = scmp.eq.s32.totalorder %s15, 0
      %p96 = por %p94, %p95
      %p97 = scmp.ne.s32.totalorder %s86, %s89
      %p98 = scmp.eq.s32.totalorder %s20, 1
      %p99 = por %p97, %p98
      %p100 = scmp.ne.s32.totalorder %s89, %s90
      %p101 = scmp.eq.s32.totalorder %s20, 0
      %p102 = por %p100, %p101
      %p103 = scmp.ne.s32.totalorder %s89, %s90
      %p104 = scmp.eq.s32.totalorder %s21, 1
      %p105 = por %p103, %p104
      %p107 = scmp.ne.s32.totalorder %s90, %s106
      %p108 = scmp.eq.s32.totalorder %s21, 0
      %p109 = por %p107, %p108
      %p110 = scmp.le.s32.totalorder 1, %s15
      %p111 = scmp.lt.s32.totalorder %s15, 3
      %p112 = pnand %p110, %p111
      %p113 = pneg %p112
      // Predicated region
      $region9: #{tpu_custom_call.1} parent=5 // pred_check
        _
      $region10: #{tpu_custom_call.1} parent=5 // pred_check_branch
        %115 = sbr.rel (%p112) target = $region12
      $region11: #{tpu_custom_call.1} parent=5 // pred_region
        %s116 = ssub.s32 %s15, 1
        // Predicated region
        $region13: #{tpu_custom_call.1} parent=11 // pred_check
          %p117 = pneg %p48
        $region14: #{tpu_custom_call.1} parent=11 // pred_check_branch
          %119 = sbr.rel (%p117) target = $region16
        $region15: #{tpu_custom_call.1} parent=11 // pred_region
          _
        $region16: #{tpu_custom_call.1} parent=11 // pred_fallthru
          _
      $region12: #{tpu_custom_call.1} parent=5 // pred_fallthru
        _
      %p120 = scmp.lt.s32.totalorder %s15, 2
      // Predicated region
      $region17: #{tpu_custom_call.1} parent=5 // pred_check
        %p121 = pneg %p120
      $region18: #{tpu_custom_call.1} parent=5 // pred_check_branch
        %123 = sbr.rel (%p121) target = $region20
      $region19: #{tpu_custom_call.1} parent=5 // pred_region
        // Predicated region
        $region21: #{tpu_custom_call.1} parent=19 // pred_check
          %p124 = pneg %p68
        $region22: #{tpu_custom_call.1} parent=19 // pred_check_branch
          %126 = sbr.rel (%p124) target = $region24
        $region23: #{tpu_custom_call.1} parent=19 // pred_region
          %s127 = sand.u32 %s58, 1
          %s128 = scalar_lea.sflag [#allocation4], %s127
          %s129 = sand.u32 %s58, 1
          %s130 = smul.addr %s129, 8
          %s131 = scalar_lea.vmem [#allocation3], %s130
          %133 = vsyncadd %s128, 0
          %s134 = smul.addr %s22, 2
          %s135 = smul.addr %s134, 4
          %s136 = scalar_lea.hbm %s1, %s135
          %s138 = sshll.u32 %s136, 4
          %s139 = int_to_ptr.hbm [resolvable:$true] %s138
          %s140 = sshll.u32 %s131, 4
          %s141 = int_to_ptr.vmem [resolvable:$true] %s140
          %143 = dma.hbm_to_vmem [thread:$0]  %s139, 128, %s141, %s128
        $region24: #{tpu_custom_call.1} parent=19 // pred_fallthru
          _
      $region20: #{tpu_custom_call.1} parent=5 // pred_fallthru
        _
      %p144 = scmp.le.s32.totalorder 1, %s15
      %p145 = scmp.lt.s32.totalorder %s15, 3
      %p146 = pnand %p144, %p145
      %p147 = pneg %p146
      // Predicated region
      $region25: #{tpu_custom_call.1} parent=5 // pred_check
        _
      $region26: #{tpu_custom_call.1} parent=5 // pred_check_branch
        %149 = sbr.rel (%p146) target = $region28
      $region27: #{tpu_custom_call.1} parent=5 // pred_region
        %s150 = ssub.s32 %s15, 1
        %s151 = sand.u32 %s61, 1
        %s152 = scalar_lea.sflag [#allocation4], %s151
        %s153 = sand.u32 %s61, 1
        %s154 = smul.addr %s153, 8
        %s155 = scalar_lea.vmem [#allocation3], %s154
        // Predicated region
        $region29: #{tpu_custom_call.1} parent=27 // pred_check
          %p156 = pneg %p74
        $region30: #{tpu_custom_call.1} parent=27 // pred_check_branch
          %158 = sbr.rel (%p156) target = $region32
        $region31: #{tpu_custom_call.1} parent=27 // pred_region
          %160 = dma.done %s152, 128
        $region32: #{tpu_custom_call.1} parent=27 // pred_fallthru
          _
        %p161 = pneg %p48
        %p162 = pneg %p45
        %s163 = sand.u32 %s61, 1
        %s164 = scalar_lea.sflag [#allocation4], %s163
        %s165 = sand.u32 %s61, 1
        %s166 = smul.addr %s165, 8
        %s167 = scalar_lea.vmem [#allocation3], %s166
        %p168 = pneg %p74
        %p169 = pneg %p71
        %p170 = pneg %p102
        %p171 = pneg %p99
        %s172 = sand.u32 %s89, 1
        %s173 = scalar_lea.sflag [#allocation5], %s172
        %s174 = sand.u32 %s89, 1
        %s175 = smul.addr %s174, 8
        %s176 = scalar_lea.vmem [#allocation6], %s175
        %v178 = vld [vmem:[%s155] sm:$0xff]
        %180 = vst [vmem:[#allocation1] ss:$2 sm:$0xff] %v178
        %v181 = vld.sshfl [vmem:[#allocation1] sm:$0xff pattern:$0x75316420]
        %v182 = vld.sshfl [vmem:[#allocation1 + $0x8] sm:$0xff pattern:$0x75316420]
        %v185 = vpack.c.bf16 %v181, %v181
        %v186 = vpack.c.bf16 %v182, %v182
        %187 = vmatpush.bf16.xpose.msra.mxu0 0
        %188 = vmatpush.bf16.xpose.msra.mxu0 0
        %189 = vmatpush.bf16.xpose.msra.mxu0 0
        %190 = vmatpush.bf16.xpose.msra.mxu0 0
        %191 = vmatpush.bf16.xpose.msra.mxu0 0
        %192 = vmatpush.bf16.xpose.msra.mxu0 0
        %193 = vmatpush.bf16.xpose.msra.mxu0 0
        %194 = vmatpush.bf16.xpose.msra.mxu0 %v185
        %195 = vmatmul.bf16.gmra.mxu0 %v185
        %v196 = vpop.f32.mrf.mxu0
        %v197 = vadd.f32 0.0, %v196
        %v198 = vpop.f32.mrf.mxu0
        %199 = vdwg.mxu0
        %200 = vmatpush.bf16.xpose.msra.mxu0 0
        %201 = vmatpush.bf16.xpose.msra.mxu0 0
        %202 = vmatpush.bf16.xpose.msra.mxu0 0
        %203 = vmatpush.bf16.xpose.msra.mxu0 0
        %204 = vmatpush.bf16.xpose.msra.mxu0 0
        %205 = vmatpush.bf16.xpose.msra.mxu0 0
        %206 = vmatpush.bf16.xpose.msra.mxu0 0
        %207 = vmatpush.bf16.xpose.msra.mxu0 %v186
        %208 = vmatmul.bf16.gmra.mxu0 %v186
        %v209 = vpop.f32.mrf.mxu0
        %v210 = vadd.f32 %v197, %v209
        %v211 = vpop.f32.mrf.mxu0
        %212 = vdwg.mxu0
        %vm213 = vcmask 27648
        %v214 = vsel %vm213, %v210, inf
        %215 = vmin.xlane.f32.xlu0 %v214
        %v216 = vpop.xlane.xlu0 %215
        %v217 = vsub.f32 %v216, %v210
        %v218 = vmul.f32 %v217, 1.442695
        %v219 = vpow.pop %v218
        %v220 = vsel %vm213, %v219, 0.0
        %221 = vadd.xlane.f32.xlu0 %v220
        %v222 = vpop.xlane.xlu0 %221
        %v223 = vrcp.pop %v222
        %v224 = vmul.f32 %v219, %v223
        %v225 = vpack.c.bf16 %v224, %v224
        %vm226 = vcmask 31744
        %v228 = vsel %vm226, %v225, 0
        %vm230 = vcmask 1041408
        %v232 = vsel %vm230, %v185, 0
        %v235 = vsel %vm230, %v186, 0
        %237 = vmatpush.bf16.msra.mxu0 0
        %238 = vmatpush.bf16.msra.mxu0 0
        %239 = vmatpush.bf16.msra.mxu0 0
        %240 = vmatpush.bf16.msra.mxu0 0
        %241 = vmatpush.bf16.msra.mxu0 0
        %242 = vmatpush.bf16.msra.mxu0 0
        %243 = vmatpush.bf16.msra.mxu0 0
        %244 = vmatpush.bf16.msra.mxu0 %v232
        %245 = vmatmul.bf16.gmra.mxu0 %v228
        %v246 = vpop.f32.mrf.mxu0
        %v247 = vadd.f32 0.0, %v246
        %v248 = vpop.f32.mrf.mxu0
        %249 = vdwg.mxu0
        %250 = vmatpush.bf16.msra.mxu0 0
        %251 = vmatpush.bf16.msra.mxu0 0
        %252 = vmatpush.bf16.msra.mxu0 0
        %253 = vmatpush.bf16.msra.mxu0 0
        %254 = vmatpush.bf16.msra.mxu0 0
        %255 = vmatpush.bf16.msra.mxu0 0
        %256 = vmatpush.bf16.msra.mxu0 0
        %257 = vmatpush.bf16.msra.mxu0 %v235
        %258 = vmatmul.bf16.gmra.mxu0 %v228
        %v259 = vpop.f32.mrf.mxu0
        %v260 = vadd.f32 0.0, %v259
        %v261 = vpop.f32.mrf.mxu0
        %262 = vdwg.mxu0
        %s263 = sld [smem:[#allocation2]]
        %v264 = vstv %s263
        %v265 = vmul.f32 %v264, %v247
        %v266 = vmul.f32 %v264, %v260
        %267 = vst [vmem:[#allocation1] ss:$2 sm:$0xff] %v178
        %v268 = vld.sshfl [vmem:[#allocation1] sm:$0xff pattern:$0x75316420]
        %v269 = vld.sshfl [vmem:[#allocation1 + $0x8] sm:$0xff pattern:$0x75316420]
        %v272 = vadd.f32 %v265, %v268
        %v273 = vadd.f32 %v266, %v269
        %v276 = vrot.slane %v273, 4
        %vm277 = vcmask 1043456
        %v278 = vsel %vm277, %v272, %v276
        %280 = vst [vmem:[%s176] sm:$0xff] %v278
        %s281 = sand.u32 %s89, 1
        %s282 = scalar_lea.sflag [#allocation5], %s281
        %s283 = sand.u32 %s89, 1
        %s284 = smul.addr %s283, 8
        %s285 = scalar_lea.vmem [#allocation6], %s284
        // Predicated region
        $region33: #{tpu_custom_call.1} parent=27 // pred_check
          %p286 = pneg %p99
        $region34: #{tpu_custom_call.1} parent=27 // pred_check_branch
          %288 = sbr.rel (%p286) target = $region36
        $region35: #{tpu_custom_call.1} parent=27 // pred_region
          %290 = vsyncadd %s282, 0
          %s291 = smul.addr %s25, 2
          %s292 = smul.addr %s24, 2
          %s293 = sadd.s32 %s291, %s292
          %s294 = smul.addr %s293, 4
          %s295 = scalar_lea.hbm %s2, %s294
          %s297 = sshll.u32 %s285, 4
          %s298 = int_to_ptr.vmem [resolvable:$true] %s297
          %s299 = sshll.u32 %s295, 4
          %s300 = int_to_ptr.hbm [resolvable:$true] %s299
          %302 = dma.vmem_to_hbm [thread:$0]  %s298, 128, %s300, %s282
        $region36: #{tpu_custom_call.1} parent=27 // pred_fallthru
          _
      $region28: #{tpu_custom_call.1} parent=5 // pred_fallthru
        _
      %p303 = scmp.le.s32.totalorder 2, %s15
      // Predicated region
      $region37: #{tpu_custom_call.1} parent=5 // pred_check
        %p304 = pneg %p303
      $region38: #{tpu_custom_call.1} parent=5 // pred_check_branch
        %306 = sbr.rel (%p304) target = $region40
      $region39: #{tpu_custom_call.1} parent=5 // pred_region
        %s307 = ssub.s32 %s15, 2
        // Predicated region
        $region41: #{tpu_custom_call.1} parent=39 // pred_check
          %p308 = pneg %p105
        $region42: #{tpu_custom_call.1} parent=39 // pred_check_branch
          %310 = sbr.rel (%p308) target = $region44
        $region43: #{tpu_custom_call.1} parent=39 // pred_region
          %s311 = sand.u32 %s90, 1
          %s312 = scalar_lea.sflag [#allocation5], %s311
          %s313 = sand.u32 %s90, 1
          %s314 = smul.addr %s313, 8
          %s315 = scalar_lea.vmem [#allocation6], %s314
          %317 = dma.done %s312, 128
        $region44: #{tpu_custom_call.1} parent=39 // pred_fallthru
          _
      $region40: #{tpu_custom_call.1} parent=5 // pred_fallthru
        _
    $region6: #{tpu_custom_call.1} parent=1 // loop_footer
      %s19 = sadd.s32 1, %s15
    $region7: #{tpu_custom_call.1} parent=1 // loop_footer_branch
      %14 = sbr.rel target = $region3
    $region8: #{tpu_custom_call.1} parent=1 // loop_exit
      _
    %318 = vsyncpa [#allocation4], 1
    %s319 = scalar_lea.sflag [#allocation4], 1
    %320 = vsyncpa %s319, 1
    %321 = vsyncpa [#allocation5], 1
    %s322 = scalar_lea.sflag [#allocation5], 1
    %323 = vsyncpa %s322, 1

</llo_original>
